<compile_context>
chip_gen: v7x
topology: tpu7x:2x2x1
jax: 0.10.0
libtpu: 0.0.40
codegen_flags: <defaults>
</compile_context>

<pallas_src>
import functools

import jax
import jax.numpy as jnp
from jax.experimental import pallas as pl
from jax.experimental.pallas import tpu as pltpu

IGNORE_INDEX = -100
_NEG_BIG = -1e30  # bias for padded vocab columns; exp() underflows to 0.


def _round_up(x, m):
    return ((x + m - 1) // m) * m


def _vmem_budget_bytes():
    """Scoped-VMEM budget from the chip when queryable (128 MiB on v5e/v6e,
    64 MiB on v7x); conservative 64 MiB fallback keeps v7x safe."""
    cap = 64 * 1024 * 1024
    try:
        info = pltpu.get_tpu_info()
        cap = int(getattr(info, "vmem_capacity_bytes", cap))
    except Exception:
        pass
    return min(int(cap * 0.8), 112 * 1024 * 1024)


def _tile_bytes(rows, cols, itemsize):
    # (8, 128) layout padding; conservative for sub-32-bit dtypes.
    return _round_up(max(rows, 1), 8) * _round_up(max(cols, 1), 128) * itemsize


def _vmem_estimate(tm, tv, d, logits_itemsize, store_logits):
    b = 0
    b += 2 * _tile_bytes(tm, d, 2)        # emb tile (bf16), double-buffered
    b += 2 * _tile_bytes(d, tv, 2)        # W tile (bf16)
    b += 2 * _tile_bytes(1, tv, 4)        # bias tile (f32)
    b += 2 * _tile_bytes(tm, 1, 4)        # target column (i32)
    b += 2 * _tile_bytes(tm, 1, 4)        # per-token loss output
    if store_logits:
        b += 2 * _tile_bytes(tm, tv, logits_itemsize)   # logits output tile
    b += 3 * _tile_bytes(tm, 1, 4)        # m / l / t accumulator scratch
    return b


def _select_tiles(m, v, d, block_m, block_v, logits_itemsize, store_logits, budget):
    tm = _round_up(min(block_m, max(m, 1)), 8)
    tv = _round_up(min(block_v, max(v, 1)), 128)
    # Shrink the vocab tile first (keeps the row tile large, which is what
    # amortizes the dominant per-row-tile W re-stream), then the row tile.
    while _vmem_estimate(tm, tv, d, logits_itemsize, store_logits) > budget and tv > 256:
        tv = max(256, ((tv // 2) // 128) * 128)
    while _vmem_estimate(tm, tv, d, logits_itemsize, store_logits) > budget and tm > 256:
        tm = max(256, ((tm // 2) // 8) * 8)
    return tm, tv


def _ar_step(emb_ref, w_ref, b_ref, tgt_ref, logits_ref, per_tok_ref,
             m_scr, l_scr, t_scr, *, ignore_index):
    tm = emb_ref.shape[0]
    tv = w_ref.shape[1]
    vj = pl.program_id(1)
    nv = pl.num_programs(1)

    @pl.when(vj == 0)
    def _init():
        m_scr[...] = jnp.full((tm, 1), -jnp.inf, jnp.float32)
        l_scr[...] = jnp.zeros((tm, 1), jnp.float32)
        t_scr[...] = jnp.zeros((tm, 1), jnp.float32)

    # ---- to_logits projection: bf16 x bf16 -> fp32 on the MXU ----
    logits = jnp.dot(emb_ref[...], w_ref[...],
                     preferred_element_type=jnp.float32)
    logits = logits + b_ref[...]                          # (tm, tv) f32
    if logits_ref is not None:
        logits_ref[...] = logits.astype(logits_ref.dtype)

    tgt_col = tgt_ref[...]                                # (tm, 1) i32

    # ---- online logsumexp across vocab tiles ----
    m_prev = m_scr[...]
    m_new = jnp.maximum(m_prev, jnp.max(logits, axis=-1, keepdims=True))
    alpha = jnp.exp(m_prev - m_new)                       # EUP
    l_scr[...] = alpha * l_scr[...] + jnp.sum(jnp.exp(logits - m_new),
                                              axis=-1, keepdims=True)
    m_scr[...] = m_new

    # ---- target-logit gather: shift the (tm,1) target, not the (tm,tv) iota ----
    base_iota = jax.lax.broadcasted_iota(jnp.int32, (tm, tv), 1)
    local_tgt = tgt_col - vj * tv
    onehot = base_iota == local_tgt
    t_scr[...] += jnp.sum(jnp.where(onehot, logits, 0.0),
                          axis=-1, keepdims=True)

    # ---- finalize per-token loss once per row tile ----
    @pl.when(vj == nv - 1)
    def _fin():
        lse = m_scr[...] + jnp.log(l_scr[...])
        per_tok = lse - t_scr[...]
        valid = tgt_col != ignore_index   # padded / ignored rows contribute 0
        per_tok_ref[...] = jnp.where(valid, per_tok, 0.0)


def _ar_kernel_with_logits(emb_ref, w_ref, b_ref, tgt_ref,
                           logits_ref, per_tok_ref,
                           m_scr, l_scr, t_scr, *, ignore_index):
    _ar_step(emb_ref, w_ref, b_ref, tgt_ref, logits_ref, per_tok_ref,
             m_scr, l_scr, t_scr, ignore_index=ignore_index)


def _ar_kernel_loss_only(emb_ref, w_ref, b_ref, tgt_ref,
                         per_tok_ref,
                         m_scr, l_scr, t_scr, *, ignore_index):
    _ar_step(emb_ref, w_ref, b_ref, tgt_ref, None, per_tok_ref,
             m_scr, l_scr, t_scr, ignore_index=ignore_index)


def prepare_params(params):
    """Cache a bf16 master of the output projection so it is not re-cast from
    fp32 on every forward (the re-cast is a pure extra D*V HBM read+write)."""
    out = dict(params)
    out["w_out_bf16"] = params["w_out"].astype(jnp.bfloat16)
    return out


def autoregressive_wrapper_forward(x, params, *, ignore_index=IGNORE_INDEX,
                                   return_loss=True, loss_only=False,
                                   block_m=512, block_v=1024,
                                   logits_dtype=jnp.bfloat16):
    """Mirrors AutoregressiveWrapper.forward (mask_prob == 0.0).

    loss_only=True elides the (M, V) logits HBM writeback entirely (use on a
    training path that only needs the scalar loss)."""
    inp = x[:, :-1]
    target = x[:, 1:]
    B, N = inp.shape
    D = params["tok_emb"].shape[1]
    V = params["w_out"].shape[1]
    M = B * N
    store_logits = not loss_only

    # Glue (XLA): embedding + positional lookup; projection + CE run in-kernel.
    emb = params["tok_emb"][inp] + params["pos_emb"][:N][None, :, :]   # (B, N, D)
    emb2 = emb.reshape(M, D).astype(jnp.bfloat16)
    w = params.get("w_out_bf16")
    if w is None:
        w = params["w_out"].astype(jnp.bfloat16)
    bias = params["b_out"].reshape(1, V).astype(jnp.float32)

    logits_itemsize = jnp.dtype(logits_dtype).itemsize
    budget = _vmem_budget_bytes()
    tm, tv = _select_tiles(M, V, D, block_m, block_v,
                           logits_itemsize, store_logits, budget)

    # Row padding: padded rows carry ignore_index targets -> masked in-kernel.
    m_pad = _round_up(M, tm)
    num_m = m_pad // tm
    # Vocab padding: zero W columns + bias = -1e30 (exp underflows) keeps
    # MXU-aligned tiles for arbitrary vocab sizes.
    v_pad = _round_up(V, tv)
    num_v = v_pad // tv
    # TODO(synk): on v7x, choosing tm so num_m is even balances the two
    #             TensorCores under the "parallel" row axis.

    if m_pad != M:
        emb2 = jnp.pad(emb2, ((0, m_pad - M), (0, 0)))
    if v_pad != V:
        w = jnp.pad(w, ((0, 0), (0, v_pad - V)))
        bias = jnp.pad(bias, ((0, 0), (0, v_pad - V)), constant_values=_NEG_BIG)

    tgt_col = target.reshape(M, 1).astype(jnp.int32)
    if m_pad != M:
        tgt_col = jnp.pad(tgt_col, ((0, m_pad - M), (0, 0)),
                          constant_values=ignore_index)

    in_specs = [
        pl.BlockSpec((tm, D), lambda i, j: (i, 0)),    # emb (bf16)
        pl.BlockSpec((D, tv), lambda i, j: (0, j)),    # W   (bf16)
        pl.BlockSpec((1, tv), lambda i, j: (0, j)),    # bias (f32)
        pl.BlockSpec((tm, 1), lambda i, j: (i, 0)),    # targets (i32 column)
    ]
    out_shape = []
    out_specs = []
    if store_logits:
        out_shape.append(jax.ShapeDtypeStruct((m_pad, v_pad), logits_dtype))
        out_specs.append(pl.BlockSpec((tm, tv), lambda i, j: (i, j)))
    out_shape.append(jax.ShapeDtypeStruct((m_pad, 1), jnp.float32))
    out_specs.append(pl.BlockSpec((tm, 1), lambda i, j: (i, 0)))

    kernel_fn = _ar_kernel_with_logits if store_logits else _ar_kernel_loss_only
    kernel = functools.partial(kernel_fn, ignore_index=ignore_index)

    bytes_accessed = (m_pad * D * 2
                      + num_m * (D * v_pad * 2 + v_pad * 4)
                      + m_pad * 4 + m_pad * 4)
    if store_logits:
        bytes_accessed += m_pad * v_pad * logits_itemsize
    cost = pl.CostEstimate(flops=2 * m_pad * D * v_pad,
                           transcendentals=m_pad * v_pad,
                           bytes_accessed=bytes_accessed)

    outs = pl.pallas_call(
        kernel,
        out_shape=tuple(out_shape),
        grid_spec=pltpu.PrefetchScalarGridSpec(
            num_scalar_prefetch=0,
            grid=(num_m, num_v),
            in_specs=in_specs,
            out_specs=tuple(out_specs),
            scratch_shapes=[
                pltpu.VMEM((tm, 1), jnp.float32),  # running max
                pltpu.VMEM((tm, 1), jnp.float32),  # running sum(exp)
                pltpu.VMEM((tm, 1), jnp.float32),  # gathered target logit
            ],
        ),
        compiler_params=pltpu.CompilerParams(
            dimension_semantics=("parallel", "arbitrary"),
            vmem_limit_bytes=budget,
        ),
        cost_estimate=cost,
    )(emb2, w, bias, tgt_col)

    if store_logits:
        logits2, per_tok = outs
    else:
        per_tok = outs[0] if isinstance(outs, (tuple, list)) else outs

    # Scalar reduction of per-token partials is cheap XLA work; the valid count
    # comes from the unpadded targets.  All-ignored batches give NaN, matching
    # F.cross_entropy(reduction='mean').
    count = jnp.sum(target.astype(jnp.int32) != ignore_index).astype(jnp.float32)
    loss = jnp.sum(per_tok) / count

    if loss_only:
        return loss
    logits = logits2[:M, :V].reshape(B, N, V)
    if return_loss:
        return logits, loss
    return logits


def _reference_forward(x, params, ignore_index=IGNORE_INDEX):
    """Pure-JAX reference mirroring F.cross_entropy(reduction='mean'),
    using the same bf16-input / fp32-accumulation numerics as the kernel."""
    inp, target = x[:, :-1], x[:, 1:]
    B, N = inp.shape
    emb = params["tok_emb"][inp] + params["pos_emb"][:N][None, :, :]
    emb_bf = emb.astype(jnp.bfloat16)
    w_bf = params["w_out"].astype(jnp.bfloat16)
    logits = jnp.einsum("bnd,dv->bnv", emb_bf, w_bf,
                        preferred_element_type=jnp.float32) + params["b_out"]
    logp = jax.nn.log_softmax(logits, axis=-1)
    tgt = target.astype(jnp.int32)
    gathered = jnp.take_along_axis(logp, jnp.clip(tgt, 0)[..., None],
                                   axis=-1)[..., 0]
    valid = tgt != ignore_index
    loss = -jnp.sum(jnp.where(valid, gathered, 0.0)) / jnp.sum(valid)
    return logits, loss


if __name__ == "__main__":
    # Small shapes consistent with the module: batch=2, seq=8, hidden=32, vocab=128.
    B, S, D, V = 2, 8, 32, 128
    MAX_SEQ_LEN = S  # net.max_seq_len

    key = jax.random.PRNGKey(0)
    k_tok, k_pos, k_w, k_b, k_x = jax.random.split(key, 5)

    raw_params = {
        "tok_emb": jax.random.normal(k_tok, (V, D), dtype=jnp.float32) * 0.02,
        "pos_emb": jax.random.normal(k_pos, (MAX_SEQ_LEN, D), dtype=jnp.float32) * 0.02,
        "w_out": jax.random.normal(k_w, (D, V), dtype=jnp.float32) * 0.05,
        "b_out": jax.random.normal(k_b, (V,), dtype=jnp.float32) * 0.01,
    }
    params = prepare_params(raw_params)

    x = jax.random.randint(k_x, (B, S), 0, V, dtype=jnp.int32)
    # Exercise ignore_index semantics on one target position.
    x = x.at[0, S - 1].set(IGNORE_INDEX)

    logits, loss = autoregressive_wrapper_forward(x, params)
    loss_only = autoregressive_wrapper_forward(x, params, loss_only=True)
    jax.block_until_ready((logits, loss, loss_only))

    ref_logits, ref_loss = _reference_forward(x, raw_params)

    assert logits.shape == (B, S - 1, V)
    # logits are returned bf16 (perf default); compare against fp32 reference.
    assert jnp.allclose(logits.astype(jnp.float32), ref_logits,
                        atol=1e-3, rtol=1e-2)
    assert jnp.allclose(loss, ref_loss, atol=1e-4, rtol=1e-4)
    assert jnp.allclose(loss_only, ref_loss, atol=1e-4, rtol=1e-4)

    print("KERNEL_OK")
</pallas_src>

<mosaic_0001>
module attributes {stable_mosaic.version = 11 : i64} {
  func.func @_ar_kernel_with_logits(%arg0: i32, %arg1: i32, %arg2: memref<16x32xbf16, #tpu.memory_space<vmem>>, %arg3: memref<32x128xbf16, #tpu.memory_space<vmem>>, %arg4: memref<1x128xf32, #tpu.memory_space<vmem>>, %arg5: memref<16x1xi32, #tpu.memory_space<vmem>>, %arg6: memref<16x128xbf16, #tpu.memory_space<vmem>>, %arg7: memref<16x1xf32, #tpu.memory_space<vmem>>, %arg8: memref<16x1xf32, #tpu.memory_space<vmem>>, %arg9: memref<16x1xf32, #tpu.memory_space<vmem>>, %arg10: memref<16x1xf32, #tpu.memory_space<vmem>>) attributes {dimension_semantics = [#tpu.dimension_semantics<parallel>, #tpu.dimension_semantics<arbitrary>], iteration_bounds = array<i64: 1, 1>, scalar_prefetch = 0 : i64, scratch_operands = 3 : i64, tpu.core_type = #tpu.core_type<tc>, window_params = [{transform_indices = @transform_0, window_bounds = array<i64: 16, 32>}, {transform_indices = @transform_1, window_bounds = array<i64: 32, 128>}, {transform_indices = @transform_2, window_bounds = array<i64: 1, 128>}, {transform_indices = @transform_3, window_bounds = array<i64: 16, 1>}, {transform_indices = @transform_4, window_bounds = array<i64: 16, 128>}, {transform_indices = @transform_5, window_bounds = array<i64: 16, 1>}]} {
    %c0_i32 = arith.constant 0 : i32
    %0 = arith.cmpi eq, %arg1, %c0_i32 : i32
    %1 = arith.extui %0 : i1 to i32
    %c0_i32_0 = arith.constant 0 : i32
    %2 = arith.cmpi ne, %1, %c0_i32_0 : i32
    scf.if %2 {
      %cst_28 = arith.constant 0xFF800000 : f32
      %44 = vector.broadcast %cst_28 : f32 to vector<16x1xf32>
      %c0_29 = arith.constant 0 : index
      %c0_30 = arith.constant 0 : index
      %45 = vector.load %arg8[%c0_29, %c0_30] : memref<16x1xf32, #tpu.memory_space<vmem>>, vector<16x1xf32>
      tpu.vector_store %arg8[%c0_29, %c0_30], %44 {strides = array<i32>} : memref<16x1xf32, #tpu.memory_space<vmem>>, vector<16x1xf32>,
      %cst_31 = arith.constant 0.000000e+00 : f32
      %46 = vector.broadcast %cst_31 : f32 to vector<16x1xf32>
      %c0_32 = arith.constant 0 : index
      %c0_33 = arith.constant 0 : index
      %47 = vector.load %arg9[%c0_32, %c0_33] : memref<16x1xf32, #tpu.memory_space<vmem>>, vector<16x1xf32>
      tpu.vector_store %arg9[%c0_32, %c0_33], %46 {strides = array<i32>} : memref<16x1xf32, #tpu.memory_space<vmem>>, vector<16x1xf32>,
      %cst_34 = arith.constant 0.000000e+00 : f32
      %48 = vector.broadcast %cst_34 : f32 to vector<16x1xf32>
      %c0_35 = arith.constant 0 : index
      %c0_36 = arith.constant 0 : index
      %49 = vector.load %arg10[%c0_35, %c0_36] : memref<16x1xf32, #tpu.memory_space<vmem>>, vector<16x1xf32>
      tpu.vector_store %arg10[%c0_35, %c0_36], %48 {strides = array<i32>} : memref<16x1xf32, #tpu.memory_space<vmem>>, vector<16x1xf32>,
    } else {
    }
    %c0 = arith.constant 0 : index
    %c0_1 = arith.constant 0 : index
    %3 = vector.load %arg2[%c0, %c0_1] : memref<16x32xbf16, #tpu.memory_space<vmem>>, vector<16x32xbf16>
    %c0_2 = arith.constant 0 : index
    %c0_3 = arith.constant 0 : index
    %4 = vector.load %arg3[%c0_2, %c0_3] : memref<32x128xbf16, #tpu.memory_space<vmem>>, vector<32x128xbf16>
    %cst = arith.constant dense<0.000000e+00> : vector<16x128xf32>
    %5 = tpu.matmul %3, %4, %cst {dimension_numbers = #tpu.dot_dimension_numbers<[1], [0], [0], [1], [0, 0, 1, 1], [], []>} : vector<16x32xbf16>, vector<32x128xbf16>, vector<16x128xf32> -> vector<16x128xf32>
    %c0_4 = arith.constant 0 : index
    %c0_5 = arith.constant 0 : index
    %6 = vector.load %arg4[%c0_4, %c0_5] : memref<1x128xf32, #tpu.memory_space<vmem>>, vector<1x128xf32>
    %7 = vector.broadcast %6 : vector<1x128xf32> to vector<16x128xf32>
    %8 = arith.addf %5, %7 : vector<16x128xf32>
    %9 = arith.truncf %8 : vector<16x128xf32> to vector<16x128xbf16>
    %c0_6 = arith.constant 0 : index
    %c0_7 = arith.constant 0 : index
    %10 = vector.load %arg6[%c0_6, %c0_7] : memref<16x128xbf16, #tpu.memory_space<vmem>>, vector<16x128xbf16>
    tpu.vector_store %arg6[%c0_6, %c0_7], %9 {strides = array<i32>} : memref<16x128xbf16, #tpu.memory_space<vmem>>, vector<16x128xbf16>,
    %c0_8 = arith.constant 0 : index
    %c0_9 = arith.constant 0 : index
    %11 = vector.load %arg5[%c0_8, %c0_9] : memref<16x1xi32, #tpu.memory_space<vmem>>, vector<16x1xi32>
    %c0_10 = arith.constant 0 : index
    %c0_11 = arith.constant 0 : index
    %12 = vector.load %arg8[%c0_10, %c0_11] : memref<16x1xf32, #tpu.memory_space<vmem>>, vector<16x1xf32>
    %cst_12 = arith.constant dense<0xFF800000> : vector<16xf32>
    %13 = vector.multi_reduction <maximumf>, %8, %cst_12 [1] : vector<16x128xf32> to vector<16xf32>
    %14 = vector.shape_cast %13 : vector<16xf32> to vector<16x1xf32>
    %15 = arith.maximumf %12, %14 : vector<16x1xf32>
    %16 = arith.subf %12, %15 : vector<16x1xf32>
    %17 = math.exp %16 : vector<16x1xf32>
    %c0_13 = arith.constant 0 : index
    %c0_14 = arith.constant 0 : index
    %18 = vector.load %arg9[%c0_13, %c0_14] : memref<16x1xf32, #tpu.memory_space<vmem>>, vector<16x1xf32>
    %19 = arith.mulf %17, %18 : vector<16x1xf32>
    %20 = vector.broadcast %15 : vector<16x1xf32> to vector<16x128xf32>
    %21 = arith.subf %8, %20 : vector<16x128xf32>
    %22 = math.exp %21 : vector<16x128xf32>
    %cst_15 = arith.constant dense<0.000000e+00> : vector<16xf32>
    %23 = vector.multi_reduction <add>, %22, %cst_15 [1] : vector<16x128xf32> to vector<16xf32>
    %24 = vector.shape_cast %23 : vector<16xf32> to vector<16x1xf32>
    %25 = arith.addf %19, %24 : vector<16x1xf32>
    %c0_16 = arith.constant 0 : index
    %c0_17 = arith.constant 0 : index
    %26 = vector.load %arg9[%c0_16, %c0_17] : memref<16x1xf32, #tpu.memory_space<vmem>>, vector<16x1xf32>
    tpu.vector_store %arg9[%c0_16, %c0_17], %25 {strides = array<i32>} : memref<16x1xf32, #tpu.memory_space<vmem>>, vector<16x1xf32>,
    %c0_18 = arith.constant 0 : index
    %c0_19 = arith.constant 0 : index
    %27 = vector.load %arg8[%c0_18, %c0_19] : memref<16x1xf32, #tpu.memory_space<vmem>>, vector<16x1xf32>
    tpu.vector_store %arg8[%c0_18, %c0_19], %15 {strides = array<i32>} : memref<16x1xf32, #tpu.memory_space<vmem>>, vector<16x1xf32>,
    %28 = tpu.iota {dimensions = array<i32: 1>} : vector<16x128xi32>
    %c128_i32 = arith.constant 128 : i32
    %29 = arith.muli %arg1, %c128_i32 : i32
    %30 = vector.broadcast %29 : i32 to vector<16x1xi32>
    %31 = arith.subi %11, %30 : vector<16x1xi32>
    %32 = vector.broadcast %31 : vector<16x1xi32> to vector<16x128xi32>
    %33 = arith.cmpi eq, %28, %32 : vector<16x128xi32>
    %c0_20 = arith.constant 0 : index
    %c0_21 = arith.constant 0 : index
    %34 = vector.load %arg10[%c0_20, %c0_21] : memref<16x1xf32, #tpu.memory_space<vmem>>, vector<16x1xf32>
    %cst_22 = arith.constant 0.000000e+00 : f32
    %35 = vector.broadcast %cst_22 : f32 to vector<16x128xf32>
    %36 = arith.select %33, %8, %35 : vector<16x128xi1>, vector<16x128xf32>
    %cst_23 = arith.constant dense<0.000000e+00> : vector<16xf32>
    %37 = vector.multi_reduction <add>, %36, %cst_23 [1] : vector<16x128xf32> to vector<16xf32>
    %38 = vector.shape_cast %37 : vector<16xf32> to vector<16x1xf32>
    %39 = arith.addf %34, %38 : vector<16x1xf32>
    %c0_24 = arith.constant 0 : index
    %c0_25 = arith.constant 0 : index
    %40 = vector.load %arg10[%c0_24, %c0_25] : memref<16x1xf32, #tpu.memory_space<vmem>>, vector<16x1xf32>
    tpu.vector_store %arg10[%c0_24, %c0_25], %39 {strides = array<i32>} : memref<16x1xf32, #tpu.memory_space<vmem>>, vector<16x1xf32>,
    %c0_i32_26 = arith.constant 0 : i32
    %41 = arith.cmpi eq, %arg1, %c0_i32_26 : i32
    %42 = arith.extui %41 : i1 to i32
    %c0_i32_27 = arith.constant 0 : i32
    %43 = arith.cmpi ne, %42, %c0_i32_27 : i32
    scf.if %43 {
      %c0_28 = arith.constant 0 : index
      %c0_29 = arith.constant 0 : index
      %44 = vector.load %arg8[%c0_28, %c0_29] : memref<16x1xf32, #tpu.memory_space<vmem>>, vector<16x1xf32>
      %c0_30 = arith.constant 0 : index
      %c0_31 = arith.constant 0 : index
      %45 = vector.load %arg9[%c0_30, %c0_31] : memref<16x1xf32, #tpu.memory_space<vmem>>, vector<16x1xf32>
      %46 = math.log %45 : vector<16x1xf32>
      %47 = arith.addf %44, %46 : vector<16x1xf32>
      %c0_32 = arith.constant 0 : index
      %c0_33 = arith.constant 0 : index
      %48 = vector.load %arg10[%c0_32, %c0_33] : memref<16x1xf32, #tpu.memory_space<vmem>>, vector<16x1xf32>
      %49 = arith.subf %47, %48 : vector<16x1xf32>
      %c-100_i32 = arith.constant -100 : i32
      %50 = vector.broadcast %c-100_i32 : i32 to vector<16x1xi32>
      %51 = arith.cmpi ne, %11, %50 : vector<16x1xi32>
      %cst_34 = arith.constant 0.000000e+00 : f32
      %52 = vector.broadcast %cst_34 : f32 to vector<16x1xf32>
      %53 = arith.select %51, %49, %52 : vector<16x1xi1>, vector<16x1xf32>
      %c0_35 = arith.constant 0 : index
      %c0_36 = arith.constant 0 : index
      %54 = vector.load %arg7[%c0_35, %c0_36] : memref<16x1xf32, #tpu.memory_space<vmem>>, vector<16x1xf32>
      tpu.vector_store %arg7[%c0_35, %c0_36], %53 {strides = array<i32>} : memref<16x1xf32, #tpu.memory_space<vmem>>, vector<16x1xf32>,
    } else {
    }
    return
  }
  func.func @transform_0(%arg0: i32, %arg1: i32) -> (i32, i32) {
    %c0_i32 = arith.constant 0 : i32
    %c0_i32_0 = arith.constant 0 : i32
    return %arg0, %c0_i32 : i32, i32
  }
  func.func @transform_1(%arg0: i32, %arg1: i32) -> (i32, i32) {
    %c0_i32 = arith.constant 0 : i32
    %c0_i32_0 = arith.constant 0 : i32
    return %c0_i32, %arg1 : i32, i32
  }
  func.func @transform_2(%arg0: i32, %arg1: i32) -> (i32, i32) {
    %c0_i32 = arith.constant 0 : i32
    %c0_i32_0 = arith.constant 0 : i32
    return %c0_i32, %arg1 : i32, i32
  }
  func.func @transform_3(%arg0: i32, %arg1: i32) -> (i32, i32) {
    %c0_i32 = arith.constant 0 : i32
    %c0_i32_0 = arith.constant 0 : i32
    return %arg0, %c0_i32 : i32, i32
  }
  func.func @transform_4(%arg0: i32, %arg1: i32) -> (i32, i32) {
    %c0_i32 = arith.constant 0 : i32
    return %arg0, %arg1 : i32, i32
  }
  func.func @transform_5(%arg0: i32, %arg1: i32) -> (i32, i32) {
    %c0_i32 = arith.constant 0 : i32
    %c0_i32_0 = arith.constant 0 : i32
    return %arg0, %c0_i32 : i32, i32
  }
}

</mosaic_0001>

<llo_original>
// kernel: tpu_custom_call.1
$region0: #{tpu_custom_call.1}
  #allocation0 [shape = 'u32[]', space=smem, size = 0x4, offset = 0x4, fixed_abs, tag = 'smem constant byte address 0x4 - core index']
  #allocation1 [shape = 'u32[144,128]{1,0:T(1,128)}', space=vmem, size = 0x12000, scoped, tag = 'internal scratch']
  #allocation2 [shape = 'f32[16,1]{1,0:T(8,128)}', space=vmem, size = 0x2000, scoped, tag = 'scratch operand']
  #allocation3 [shape = 'f32[16,1]{1,0:T(8,128)}', space=vmem, size = 0x2000, scoped, tag = 'scratch operand']
  #allocation4 [shape = 'f32[16,1]{1,0:T(8,128)}', space=vmem, size = 0x2000, scoped, tag = 'scratch operand']
  %s0 = inlined_call_operand.hbm [shape: bf16[16,32], index: 0, kind: input, shape index: {}]
  %s1 = inlined_call_operand.vmem [shape: bf16[32,128], index: 1, kind: input, shape index: {}]
  %s2 = inlined_call_operand.vmem [shape: f32[1,128], index: 2, kind: input, shape index: {}]
  %s3 = inlined_call_operand.vmem [shape: s32[16,1], index: 3, kind: input, shape index: {}]
  %s4 = inlined_call_operand.hbm [shape: bf16[16,128], index: 4, kind: output, shape index: {0}]
  %s5 = inlined_call_operand.vmem [shape: f32[16,1], index: 5, kind: output, shape index: {1}]
  %6 = xla_tuple %s4, %s5
  %s7 = sld [smem:[#allocation0]]
  $region46: #{tpu_custom_call.1} parent=0
    _
  %s9 = ssub.s32 1, %s7
  %s10 = scalar_select 0, %s9, %s7
  $region1: #{tpu_custom_call.1} parent=0
    #allocation5 [shape = 'u8[4096]{0}', space=vmem, size = 0x1000, scoped, tag = 'input window, operand 0, single buffered']
    #allocation6 [shape = 's32[1]{0}', space=sflag, size = 0x4, scoped, tag = 'scoped memory for tpu_custom_call.1']
    #allocation7 [shape = 's32[1]{0}', space=sflag, size = 0x4, scoped, tag = 'scoped memory for tpu_custom_call.1']
    #allocation8 [shape = 'u8[4096]{0}', space=vmem, size = 0x1000, scoped, tag = 'output window, operand 0, single buffered']
    %11 = vsyncpa [#allocation6], 0
    %12 = vsyncpa [#allocation7], 0
    // Predicated region
    $region2: #{tpu_custom_call.1} parent=1 // pred_check
      _
    $region3: #{tpu_custom_call.1} parent=1 // pred_check_branch
      %14 = sbr.rel (0) target = $region5
    $region4: #{tpu_custom_call.1} parent=1 // pred_region
      %s16 = ssub.s32 128, 128
      %17 = vsyncadd [#allocation6], %s16
      %s18 = sshll.u32 [#allocation5], 4
      %s19 = int_to_ptr.vmem [resolvable:$true] %s18
      %24 = dma.hbm_to_vmem [thread:$0]  %s0, 128, %s19, [#allocation6], 64, 64, 4
    $region5: #{tpu_custom_call.1} parent=1 // pred_fallthru
      _
    // Predicated region
    $region6: #{tpu_custom_call.1} parent=1 // pred_check
      _
    $region7: #{tpu_custom_call.1} parent=1 // pred_check_branch
      %26 = sbr.rel (0) target = $region9
    $region8: #{tpu_custom_call.1} parent=1 // pred_region
      _
    $region9: #{tpu_custom_call.1} parent=1 // pred_fallthru
      _
    // Predicated region
    $region10: #{tpu_custom_call.1} parent=1 // pred_check
      _
    $region11: #{tpu_custom_call.1} parent=1 // pred_check_branch
      %28 = sbr.rel (0) target = $region13
    $region12: #{tpu_custom_call.1} parent=1 // pred_region
      _
    $region13: #{tpu_custom_call.1} parent=1 // pred_fallthru
      _
    // Predicated region
    $region14: #{tpu_custom_call.1} parent=1 // pred_check
      _
    $region15: #{tpu_custom_call.1} parent=1 // pred_check_branch
      %30 = sbr.rel (0) target = $region17
    $region16: #{tpu_custom_call.1} parent=1 // pred_region
      _
    $region17: #{tpu_custom_call.1} parent=1 // pred_fallthru
      _
    // Predicated region
    $region18: #{tpu_custom_call.1} parent=1 // pred_check
      _
    $region19: #{tpu_custom_call.1} parent=1 // pred_check_branch
      %32 = sbr.rel (0) target = $region21
    $region20: #{tpu_custom_call.1} parent=1 // pred_region
      %33 = dma.done [#allocation6], 128
    $region21: #{tpu_custom_call.1} parent=1 // pred_fallthru
      _
    %p35 = scmp.eq.s32.totalorder 0, 0
    // Predicated region
    $region22: #{tpu_custom_call.1} parent=1 // pred_check
      %p36 = pneg %p35
    $region23: #{tpu_custom_call.1} parent=1 // pred_check_branch
      %38 = sbr.rel (%p36) target = $region25
    $region24: #{tpu_custom_call.1} parent=1 // pred_region
      %vm39 = vcmask 7168
      %40 = vst.msk [vmem:[#allocation2] sm:$0xff] %vm39, -inf
      %41 = vst.msk [vmem:[#allocation2 + $0x8] sm:$0xff] %vm39, -inf
      %42 = vst.msk [vmem:[#allocation3] sm:$0xff] %vm39, 0.0
      %43 = vst.msk [vmem:[#allocation3 + $0x8] sm:$0xff] %vm39, 0.0
      %44 = vst.msk [vmem:[#allocation4] sm:$0xff] %vm39, 0.0
      %45 = vst.msk [vmem:[#allocation4 + $0x8] sm:$0xff] %vm39, 0.0
    $region25: #{tpu_custom_call.1} parent=1 // pred_fallthru
      _
    %v46 = vld [vmem:[#allocation5] sm:$0xf]
    %v47 = vld [vmem:[#allocation5 + $0x4] sm:$0xf]
    %v48 = vld [vmem:[%s1] sm:$0xf]
    %v49 = vld [vmem:[%s1 + $0x4] sm:$0xf]
    %v50 = vld [vmem:[%s1 + $0x8] sm:$0xf]
    %v51 = vld [vmem:[%s1 + $0xc] sm:$0xf]
    %v52 = vld [vmem:[%s2] sm:$0x1]
    %v54 = vlaneseq
    %v55 = vshrl.u32 %v54, 7
    %v56 = vsub.s32 0, %v55
    %v57 = vrot.slane %v52, %v56
    %v61 = vunpack.c.l.b16 %v46
    %v62 = vunpack.c.l.b16 %v47
    %v63 = vpack.c.b16 %v62, %v61
    %v68 = vunpack.c.l.b16 %v48
    %v69 = vunpack.c.l.b16 %v49
    %v70 = vunpack.c.l.b16 %v50
    %v71 = vunpack.c.l.b16 %v51
    %v72 = vpack.c.b16 %v69, %v68
    %v73 = vpack.c.b16 %v71, %v70
    %vm76 = vcmask 261120
    %v78 = vsel %vm76, %v63, 0
    %80 = vmatprep.subr.bf16.mxu0 0
    %81 = vmatpush1.bf16.msra.mxu0 %v72
    %82 = vmatprep.subr.bf16.mxu0 0
    %83 = vmatpush1.bf16.msra.mxu0 %v73
    %84 = vmatprep.subr.bf16.mxu0 0
    %85 = vmatpush1.bf16.msra.mxu0 0
    %86 = vmatprep.subr.bf16.mxu0 0
    %87 = vmatpush1.bf16.msra.mxu0 0
    %88 = vmatprep.subr.bf16.mxu0 0
    %89 = vmatpush1.bf16.msra.mxu0 0
    %90 = vmatprep.subr.bf16.mxu0 0
    %91 = vmatpush1.bf16.msra.mxu0 0
    %92 = vmatprep.subr.bf16.mxu0 0
    %93 = vmatpush1.bf16.msra.mxu0 0
    %94 = vmatprep.subr.bf16.mxu0 0
    %95 = vmatpush1.bf16.msra.mxu0 0
    %96 = vmatprep.subr.bf16.mxu0 0
    %97 = vmatpush1.bf16.msra.mxu0 0
    %98 = vmatprep.subr.bf16.mxu0 0
    %99 = vmatpush1.bf16.msra.mxu0 0
    %100 = vmatprep.subr.bf16.mxu0 0
    %101 = vmatpush1.bf16.msra.mxu0 0
    %102 = vmatprep.subr.bf16.mxu0 0
    %103 = vmatpush1.bf16.msra.mxu0 0
    %104 = vmatprep.subr.bf16.mxu0 0
    %105 = vmatpush1.bf16.msra.mxu0 0
    %106 = vmatprep.subr.bf16.mxu0 0
    %107 = vmatpush1.bf16.msra.mxu0 0
    %108 = vmatprep.subr.bf16.mxu0 0
    %109 = vmatpush1.bf16.msra.mxu0 0
    %110 = vmatprep.subr.bf16.mxu0 0
    %111 = vmatpush1.bf16.msra.mxu0 0
    %112 = vmatprep.mubr.bf16.mxu0 0
    %113 = vmatmul.mubr.bf16.gmra.mrb[0].mxu0 %v78
    %v114 = vpop.f32.mrb[0].mxu0
    %v115 = vadd.f32 %v57, %v114
    %v116 = vpop.f32.mrb[0].mxu0
    %v117 = vpop.f32.mrb[0].mxu0
    %v118 = vadd.f32 %v57, %v117
    %v119 = vpop.f32.mrb[0].mxu0
    %120 = vdwg.mxu0
    %v121 = vpack.c.bf16 %v118, %v115
    %v123 = vunpack.c.l.b16 %v121
    %v124 = vunpack.c.h.b16 %v121
    %v125 = vpack.c.b16 %v123, %v123
    %v126 = vpack.c.b16 %v124, %v124
    %129 = vst [vmem:[#allocation8] sm:$0xf] %v125
    %130 = vst [vmem:[#allocation8 + $0x4] sm:$0xf] %v126
    %v131 = vld [vmem:[%s3] sm:$0xff]
    %v132 = vld [vmem:[%s3 + $0x8] sm:$0xff]
    %v133 = vld [vmem:[#allocation2] sm:$0xff]
    %v134 = vld [vmem:[#allocation2 + $0x8] sm:$0xff]
    %135 = vmax.xlane.f32.xlu0 %v115
    %v136 = vpop.xlane.xlu0 %135
    %137 = vmax.xlane.f32.xlu0 %v118
    %v138 = vpop.xlane.xlu0 %137
    %v139 = vmax.f32 %v133, %v136
    %v140 = vmax.f32 %v134, %v138
    %v141 = vsub.f32 %v133, %v139
    %v142 = vsub.f32 %v134, %v140
    %v143 = vmul.f32 %v141, 1.442695
    %v144 = vpow.pop %v143
    %v145 = vmul.f32 %v142, 1.442695
    %v146 = vpow.pop %v145
    %v147 = vld [vmem:[#allocation3] sm:$0xff]
    %v148 = vld [vmem:[#allocation3 + $0x8] sm:$0xff]
    %v149 = vmul.f32 %v144, %v147
    %v150 = vmul.f32 %v146, %v148
    %152 = vset.pattern.permute.xlu0 0
    %153 = vperm.xlu0 %152, %v139
    %v154 = vpop.permute.xlu0 %153
    %157 = vset.pattern.permute.xlu0 0
    %158 = vperm.xlu0 %157, %v140
    %v159 = vpop.permute.xlu0 %158
    %v161 = vsub.f32 %v115, %v154
    %v162 = vsub.f32 %v118, %v159
    %v163 = vmul.f32 %v161, 1.442695
    %v164 = vpow.pop %v163
    %v165 = vmul.f32 %v162, 1.442695
    %v166 = vpow.pop %v165
    %167 = vadd.xlane.f32.xlu0 %v164
    %v168 = vpop.xlane.xlu0 %167
    %169 = vadd.xlane.f32.xlu0 %v166
    %v170 = vpop.xlane.xlu0 %169
    %v171 = vadd.f32 %v149, %v168
    %v172 = vadd.f32 %v150, %v170
    %vm173 = vcmask 7168
    %174 = vst.msk [vmem:[#allocation3] sm:$0xff] %vm173, %v171
    %175 = vst.msk [vmem:[#allocation3 + $0x8] sm:$0xff] %vm173, %v172
    %176 = vst.msk [vmem:[#allocation2] sm:$0xff] %vm173, %v139
    %177 = vst.msk [vmem:[#allocation2 + $0x8] sm:$0xff] %vm173, %v140
    %v178 = vlaneseq
    %v179 = vand.u32 %v178, 127
    %s180 = smul.u32 0, 128
    %v181 = vstv %s180
    %v182 = vsub.s32 %v131, %v181
    %v183 = vsub.s32 %v132, %v181
    %184 = vset.pattern.permute.xlu0 0
    %185 = vperm.xlu0 %184, %v182
    %v186 = vpop.permute.xlu0 %185
    %187 = vset.pattern.permute.xlu0 0
    %188 = vperm.xlu0 %187, %v183
    %v189 = vpop.permute.xlu0 %188
    %vm190 = vcmp.eq.s32.totalorder %v179, %v186
    %vm191 = vcmp.eq.s32.totalorder %v179, %v189
    %v192 = vld [vmem:[#allocation4] sm:$0xff]
    %v193 = vld [vmem:[#allocation4 + $0x8] sm:$0xff]
    %v194 = vsel %vm190, %v115, 0.0
    %v195 = vsel %vm191, %v118, 0.0
    %196 = vadd.xlane.f32.xlu0 %v194
    %v197 = vpop.xlane.xlu0 %196
    %198 = vadd.xlane.f32.xlu0 %v195
    %v199 = vpop.xlane.xlu0 %198
    %v200 = vadd.f32 %v192, %v197
    %v201 = vadd.f32 %v193, %v199
    %202 = vst.msk [vmem:[#allocation4] sm:$0xff] %vm173, %v200
    %203 = vst.msk [vmem:[#allocation4 + $0x8] sm:$0xff] %vm173, %v201
    // Predicated region
    $region26: #{tpu_custom_call.1} parent=1 // pred_check
      %p204 = pneg %p35
    $region27: #{tpu_custom_call.1} parent=1 // pred_check_branch
      %206 = sbr.rel (%p204) target = $region29
    $region28: #{tpu_custom_call.1} parent=1 // pred_region
      %v207 = vld [vmem:[#allocation2] sm:$0xff]
      %v208 = vld [vmem:[#allocation2 + $0x8] sm:$0xff]
      %v209 = vld [vmem:[#allocation3] sm:$0xff]
      %v210 = vld [vmem:[#allocation3 + $0x8] sm:$0xff]
      %v211 = vlog2.pop %v209
      %v212 = vmul.f32 %v211, 0.6931472
      %v213 = vlog2.pop %v210
      %v214 = vmul.f32 %v213, 0.6931472
      %v215 = vadd.f32 %v207, %v212
      %v216 = vadd.f32 %v208, %v214
      %v217 = vld [vmem:[#allocation4] sm:$0xff]
      %v218 = vld [vmem:[#allocation4 + $0x8] sm:$0xff]
      %v219 = vsub.f32 %v215, %v217
      %v220 = vsub.f32 %v216, %v218
      %vm221 = vcmp.ne.s32.totalorder %v131, 4294967196
      %vm222 = vcmp.ne.s32.totalorder %v132, 4294967196
      %v223 = vsel %vm221, %v219, 0.0
      %v224 = vsel %vm222, %v220, 0.0
      %225 = vst.msk [vmem:[%s5] sm:$0xff] %vm173, %v223
      %226 = vst.msk [vmem:[%s5 + $0x8] sm:$0xff] %vm173, %v224
    $region29: #{tpu_custom_call.1} parent=1 // pred_fallthru
      _
    // Predicated region
    $region30: #{tpu_custom_call.1} parent=1 // pred_check
      _
    $region31: #{tpu_custom_call.1} parent=1 // pred_check_branch
      %228 = sbr.rel (0) target = $region33
    $region32: #{tpu_custom_call.1} parent=1 // pred_region
      %s230 = ssub.s32 128, 128
      %231 = vsyncadd [#allocation7], %s230
      %s232 = sshll.u32 [#allocation8], 4
      %s233 = int_to_ptr.vmem [resolvable:$true] %s232
      %238 = dma.vmem_to_hbm [thread:$0]  %s233, 128, %s4, [#allocation7], 64, 64, 4
    $region33: #{tpu_custom_call.1} parent=1 // pred_fallthru
      _
    // Predicated region
    $region34: #{tpu_custom_call.1} parent=1 // pred_check
      _
    $region35: #{tpu_custom_call.1} parent=1 // pred_check_branch
      %240 = sbr.rel (0) target = $region37
    $region36: #{tpu_custom_call.1} parent=1 // pred_region
      _
    $region37: #{tpu_custom_call.1} parent=1 // pred_fallthru
      _
    // Predicated region
    $region38: #{tpu_custom_call.1} parent=1 // pred_check
      _
    $region39: #{tpu_custom_call.1} parent=1 // pred_check_branch
      %242 = sbr.rel (0) target = $region41
    $region40: #{tpu_custom_call.1} parent=1 // pred_region
      %243 = dma.done [#allocation7], 128
    $region41: #{tpu_custom_call.1} parent=1 // pred_fallthru
      _
    // Predicated region
    $region42: #{tpu_custom_call.1} parent=1 // pred_check
      _
    $region43: #{tpu_custom_call.1} parent=1 // pred_check_branch
      %245 = sbr.rel (0) target = $region45
    $region44: #{tpu_custom_call.1} parent=1 // pred_region
      _
    $region45: #{tpu_custom_call.1} parent=1 // pred_fallthru
      _
    %246 = vsyncpa [#allocation6], 1
    %247 = vsyncpa [#allocation7], 1

</llo_original>
